<compile_context>
chip_gen: v7x
topology: tpu7x:2x2x1
jax: 0.10.0
libtpu: 0.0.40
codegen_flags: <defaults>
</compile_context>

<pallas_src>
import functools

import jax
import jax.numpy as jnp
from jax.experimental import pallas as pl
from jax.experimental.pallas import tpu as pltpu


def _round_up(v, m):
    return ((v + m - 1) // m) * m


# ----------------------------------------------------------------------------
# Tiled linear kernel:  y = x @ w + b  (optionally fused tanh)
# ----------------------------------------------------------------------------
def _linear_kernel(x_ref, w_ref, b_ref, o_ref, *, apply_tanh):
    y = jnp.dot(x_ref[...], w_ref[...], preferred_element_type=jnp.float32)
    y = y + b_ref[...]
    if apply_tanh:
        y = jnp.tanh(y)
    o_ref[...] = y


def linear_pallas(x, w, b, *, apply_tanh=False, bm=256, bn=512):
    """x: (M, K) f32, w: (K, N) f32, b: (N,) f32 -> (M, N) f32."""
    M, K = x.shape
    N = w.shape[1]
    bm = min(bm, _round_up(M, 8))
    bn = min(bn, _round_up(N, 128))
    Mp, Np = _round_up(M, bm), _round_up(N, bn)
    x_p = jnp.pad(x, ((0, Mp - M), (0, 0)))
    w_p = jnp.pad(w, ((0, 0), (0, Np - N)))
    b_p = jnp.pad(b, (0, Np - N)).reshape(1, Np)

    out = pl.pallas_call(
        functools.partial(_linear_kernel, apply_tanh=apply_tanh),
        out_shape=jax.ShapeDtypeStruct((Mp, Np), jnp.float32),
        grid_spec=pltpu.PrefetchScalarGridSpec(
            num_scalar_prefetch=0,
            grid=(Mp // bm, Np // bn),
            in_specs=[
                pl.BlockSpec((bm, K), lambda i, j: (i, 0)),
                pl.BlockSpec((K, bn), lambda i, j: (0, j)),
                pl.BlockSpec((1, bn), lambda i, j: (0, j)),
            ],
            out_specs=pl.BlockSpec((bm, bn), lambda i, j: (i, j)),
        ),
        compiler_params=pltpu.CompilerParams(
            dimension_semantics=("parallel", "parallel")),
    )(x_p, w_p, b_p)
    return out[:M, :N]


# ----------------------------------------------------------------------------
# Fused bidirectional LSTM recurrence (input projection already hoisted out)
# ----------------------------------------------------------------------------
def _bilstm_kernel(gates_ref, whh_ref, out_ref, h_scr, c_scr):
    """One time-block of the fused forward+reverse LSTM recurrence.

    gates_ref : (T_BLK, 4, 2, B, H)  precomputed x @ W_ih + b, gate-major, in
                "walk" order (direction 1 is the time-reversed sequence, so
                both directions march over the same walk index).
    whh_ref   : (4, 2, H, H)         recurrent weights, gate-major (resident).
    out_ref   : (T_BLK, 2, B, H)     hidden states in walk order.
    h_scr/c_scr : (2, B, H)          state carried across time blocks.
    """
    t_blk = gates_ref.shape[0]

    @pl.when(pl.program_id(0) == 0)
    def _():
        h_scr[...] = jnp.zeros_like(h_scr)
        c_scr[...] = jnp.zeros_like(c_scr)

    # Resident weights: load once per grid step, reused by the unrolled loop.
    w_i = whh_ref[0]
    w_f = whh_ref[1]
    w_g = whh_ref[2]
    w_o = whh_ref[3]

    def step(s, carry):
        h, c = carry

        def rec(wg):  # h @ W_hh for both directions, batched on the MXU
            return jnp.einsum("dbh,dhk->dbk", h, wg,
                              preferred_element_type=jnp.float32)

        i_g = jax.nn.sigmoid(gates_ref[s, 0] + rec(w_i))
        f_g = jax.nn.sigmoid(gates_ref[s, 1] + rec(w_f))
        g_g = jnp.tanh(gates_ref[s, 2] + rec(w_g))
        o_g = jax.nn.sigmoid(gates_ref[s, 3] + rec(w_o))

        c_new = f_g * c + i_g * g_g
        h_new = o_g * jnp.tanh(c_new)
        out_ref[s] = h_new
        return h_new, c_new

    h_fin, c_fin = jax.lax.fori_loop(
        0, t_blk, step, (h_scr[...], c_scr[...]), unroll=True)
    h_scr[...] = h_fin
    c_scr[...] = c_fin


def bilstm_fused(gates_slab, whh_pack, t_blk):
    """gates_slab: (Lpad, 4, 2, B, H); whh_pack: (4, 2, H, H) -> (Lpad, 2, B, H)."""
    Lpad, n_gates, n_dir, B, H = gates_slab.shape
    assert Lpad % t_blk == 0

    def build(weight_mode):
        kwargs = {} if weight_mode is None else {"pipeline_mode": weight_mode}
        return pl.pallas_call(
            _bilstm_kernel,
            out_shape=jax.ShapeDtypeStruct((Lpad, n_dir, B, H), jnp.float32),
            grid_spec=pltpu.PrefetchScalarGridSpec(
                num_scalar_prefetch=0,
                grid=(Lpad // t_blk,),
                in_specs=[
                    pl.BlockSpec((t_blk, n_gates, n_dir, B, H),
                                 lambda i: (i, 0, 0, 0, 0)),
                    pl.BlockSpec((n_gates, n_dir, H, H),
                                 lambda i: (0, 0, 0, 0), **kwargs),
                ],
                out_specs=pl.BlockSpec((t_blk, n_dir, B, H),
                                       lambda i: (i, 0, 0, 0)),
                scratch_shapes=[
                    pltpu.VMEM((n_dir, B, H), jnp.float32),   # h
                    pltpu.VMEM((n_dir, B, H), jnp.float32),   # c
                ],
            ),
            compiler_params=pltpu.CompilerParams(
                dimension_semantics=("arbitrary",),
                vmem_limit_bytes=64 * 1024 * 1024,
            ),
        )

    try:
        # W_hh never changes across the grid -> single-buffer the resident block.
        return build(pl.Buffered(1))(gates_slab, whh_pack)
    except Exception:
        # Older jax without BlockSpec.pipeline_mode / Buffered(1): default buffering.
        return build(None)(gates_slab, whh_pack)


# ----------------------------------------------------------------------------
# Parameter packing / init
# ----------------------------------------------------------------------------
def _pack_layer(p, H):
    """Pack one LSTM layer's weights for the hoisted projection + fused kernel."""
    # (D_in, 8H): columns ordered [dir f: i,f,g,o | dir b: i,f,g,o]
    w_cat = jnp.concatenate([p["w_ih_f"].T, p["w_ih_b"].T], axis=1)
    b_cat = jnp.concatenate([p["b_f"], p["b_b"]], axis=0)          # (8H,)

    def pack_whh(w_hh):  # (4H, H) -> (4, H, H), gate-major, input-major
        return jnp.transpose(w_hh.T.reshape(H, 4, H), (1, 0, 2))

    whh_pack = jnp.stack([pack_whh(p["w_hh_f"]), pack_whh(p["w_hh_b"])],
                         axis=1)                                   # (4, 2, H, H)
    return w_cat, b_cat, whh_pack


def init_params(key, input_dim, hidden_dim, num_layers):
    def unif(k, shape, scale):
        return jax.random.uniform(k, shape, jnp.float32, -scale, scale)

    keys = iter(jax.random.split(key, 8 + 8 * num_layers))
    s_in = 1.0 / jnp.sqrt(input_dim)
    s_h = 1.0 / jnp.sqrt(hidden_dim)

    params = {
        "embedding": {
            "w": unif(next(keys), (input_dim, hidden_dim), s_in),
            "b": unif(next(keys), (hidden_dim,), s_in),
        },
        "reweight": {
            "w": unif(next(keys), (2 * num_layers,), 1.0 / jnp.sqrt(2 * num_layers)),
            "b": unif(next(keys), (1,), 1.0 / jnp.sqrt(2 * num_layers)),
        },
        "linear": {
            "w": unif(next(keys), (hidden_dim, hidden_dim), s_h),
            "b": unif(next(keys), (hidden_dim,), s_h),
        },
        "lstm": [],
    }
    for layer in range(num_layers):
        d_in = hidden_dim if layer == 0 else 2 * hidden_dim
        layer_p = {}
        for d in ("f", "b"):
            layer_p["w_ih_" + d] = unif(next(keys), (4 * hidden_dim, d_in), s_h)
            layer_p["w_hh_" + d] = unif(next(keys), (4 * hidden_dim, hidden_dim), s_h)
            # combined b_ih + b_hh
            layer_p["b_" + d] = unif(next(keys), (4 * hidden_dim,), s_h) + unif(
                next(keys), (4 * hidden_dim,), s_h)
        params["lstm"].append(layer_p)
    return params


# ----------------------------------------------------------------------------
# Forward pass (mirrors ProteinLSTM.forward, layer_norm=False, dropout=0)
# ----------------------------------------------------------------------------
def protein_lstm_forward(params, residue_feature, num_residues, time_block=8):
    input_dim = params["embedding"]["w"].shape[0]
    H = params["embedding"]["w"].shape[1]
    num_layers = len(params["lstm"])
    padding_id = input_dim - 1

    B = len(num_residues)
    max_len = max(num_residues)
    L = max_len
    Lpad = _round_up(L, time_block)

    # TODO(synk): functional.variadic_to_padded / padded_to_variadic ragged
    # packing stays in plain JAX (data-dependent gather/scatter glue).
    # Pad value = padding_id across all channels, matching the torchdrug call.
    padded = jnp.full((B, max_len, input_dim), float(padding_id), jnp.float32)
    offset = 0
    for b, n in enumerate(num_residues):
        padded = padded.at[b, :n].set(
            residue_feature[offset:offset + n].astype(jnp.float32))
        offset += n

    # --- embedding Linear (tiled Pallas matmul) ---
    x = linear_pallas(padded.reshape(B * max_len, input_dim),
                      params["embedding"]["w"], params["embedding"]["b"])
    x = x.reshape(B, max_len, H)
    # layer_norm=None, dropout=None in this config

    # --- bidirectional multi-layer LSTM ---
    layer_in = jnp.transpose(x, (1, 0, 2))  # (L, B, H) time-major
    h_finals = []
    for layer in range(num_layers):
        p = params["lstm"][layer]
        w_cat, b_cat, whh_pack = _pack_layer(p, H)
        d_in = layer_in.shape[-1]

        # Hoisted input projection: one big MXU matmul for all timesteps & dirs.
        big = linear_pallas(layer_in.reshape(L * B, d_in), w_cat, b_cat)
        big = big.reshape(L, B, 2, 4, H)          # (t, batch, dir, gate, H)
        gates_f = big[:, :, 0]                    # (L, B, 4, H), forward time
        gates_b = jnp.flip(big[:, :, 1], axis=0)  # reverse dir in walk order
        slab = jnp.stack([gates_f, gates_b], axis=2)      # (L, B, 2, 4, H)
        slab = jnp.transpose(slab, (0, 3, 2, 1, 4))       # (L, 4, 2, B, H)
        slab = jnp.pad(slab, ((0, Lpad - L), (0, 0), (0, 0), (0, 0), (0, 0)))

        out = bilstm_fused(slab, whh_pack, time_block)    # (Lpad, 2, B, H)
        out_f = out[:L, 0]                                # forward outputs
        out_b = jnp.flip(out[:L, 1], axis=0)              # back to original time
        # Final hiddens recovered in JAX (no per-step hN writeback in-kernel).
        h_finals.append(out[L - 1, 0])
        h_finals.append(out[L - 1, 1])
        layer_in = jnp.concatenate([out_f, out_b], axis=-1)  # (L, B, 2H)

    output = jnp.transpose(layer_in, (1, 0, 2))   # (B, L, 2H), batch_first
    h_n = jnp.stack(h_finals, axis=0)             # (2*num_layers, B, H)

    # --- padded_to_variadic (glue) ---
    residue_feature_out = jnp.concatenate(
        [output[b, :n] for b, n in enumerate(num_residues)], axis=0)

    # --- reweight(h_n.permute(1,2,0)).squeeze(-1) -> linear -> tanh ---
    # reweight is a ~4K-FLOP weighted sum: plain JAX, then fused linear+tanh kernel.
    g = jnp.einsum("kbh,k->bh", h_n, params["reweight"]["w"]) + params["reweight"]["b"][0]
    graph_feature = linear_pallas(g, params["linear"]["w"], params["linear"]["b"],
                                  apply_tanh=True)

    return {"graph_feature": graph_feature, "residue_feature": residue_feature_out}


# ----------------------------------------------------------------------------
if __name__ == "__main__":
    input_dim = 21      # residue feature dim (padding_id = 20)
    hidden_dim = 32
    num_layers = 2
    num_residues = [10, 6]          # 2 proteins
    total_residues = sum(num_residues)

    key = jax.random.PRNGKey(0)
    k_param, k_feat = jax.random.split(key)
    params = init_params(k_param, input_dim, hidden_dim, num_layers)
    residue_feature = jax.random.normal(k_feat, (total_residues, input_dim), jnp.float32)

    out = protein_lstm_forward(params, residue_feature, num_residues, time_block=8)
    jax.block_until_ready(out["graph_feature"])
    jax.block_until_ready(out["residue_feature"])

    assert out["graph_feature"].shape == (len(num_residues), hidden_dim)
    assert out["residue_feature"].shape == (total_residues, 2 * hidden_dim)
    print("KERNEL_OK")
</pallas_src>

<mosaic_0001>
module attributes {stable_mosaic.version = 11 : i64} {
  func.func @_linear_kernel(%arg0: i32, %arg1: i32, %arg2: memref<24x21xf32, #tpu.memory_space<vmem>>, %arg3: memref<21x128xf32, #tpu.memory_space<vmem>>, %arg4: memref<1x128xf32, #tpu.memory_space<vmem>>, %arg5: memref<24x128xf32, #tpu.memory_space<vmem>>) attributes {dimension_semantics = [#tpu.dimension_semantics<parallel>, #tpu.dimension_semantics<parallel>], iteration_bounds = array<i64: 1, 1>, scalar_prefetch = 0 : i64, scratch_operands = 0 : i64, tpu.core_type = #tpu.core_type<tc>, window_params = [{transform_indices = @transform_0, window_bounds = array<i64: 24, 21>}, {transform_indices = @transform_1, window_bounds = array<i64: 21, 128>}, {transform_indices = @transform_2, window_bounds = array<i64: 1, 128>}, {transform_indices = @transform_3, window_bounds = array<i64: 24, 128>}]} {
    %c0 = arith.constant 0 : index
    %c0_0 = arith.constant 0 : index
    %0 = vector.load %arg2[%c0, %c0_0] : memref<24x21xf32, #tpu.memory_space<vmem>>, vector<24x21xf32>
    %c0_1 = arith.constant 0 : index
    %c0_2 = arith.constant 0 : index
    %1 = vector.load %arg3[%c0_1, %c0_2] : memref<21x128xf32, #tpu.memory_space<vmem>>, vector<21x128xf32>
    %cst = arith.constant dense<0.000000e+00> : vector<24x128xf32>
    %2 = tpu.matmul %0, %1, %cst {dimension_numbers = #tpu.dot_dimension_numbers<[1], [0], [0], [1], [0, 0, 1, 1], [], []>} : vector<24x21xf32>, vector<21x128xf32>, vector<24x128xf32> -> vector<24x128xf32>
    %c0_3 = arith.constant 0 : index
    %c0_4 = arith.constant 0 : index
    %3 = vector.load %arg4[%c0_3, %c0_4] : memref<1x128xf32, #tpu.memory_space<vmem>>, vector<1x128xf32>
    %4 = vector.broadcast %3 : vector<1x128xf32> to vector<24x128xf32>
    %5 = arith.addf %2, %4 : vector<24x128xf32>
    %c0_5 = arith.constant 0 : index
    %c0_6 = arith.constant 0 : index
    %6 = vector.load %arg5[%c0_5, %c0_6] : memref<24x128xf32, #tpu.memory_space<vmem>>, vector<24x128xf32>
    tpu.vector_store %arg5[%c0_5, %c0_6], %5 {strides = array<i32>} : memref<24x128xf32, #tpu.memory_space<vmem>>, vector<24x128xf32>,
    return
  }
  func.func @transform_0(%arg0: i32, %arg1: i32) -> (i32, i32) {
    %c0_i32 = arith.constant 0 : i32
    %c0_i32_0 = arith.constant 0 : i32
    return %arg0, %c0_i32 : i32, i32
  }
  func.func @transform_1(%arg0: i32, %arg1: i32) -> (i32, i32) {
    %c0_i32 = arith.constant 0 : i32
    %c0_i32_0 = arith.constant 0 : i32
    return %c0_i32, %arg1 : i32, i32
  }
  func.func @transform_2(%arg0: i32, %arg1: i32) -> (i32, i32) {
    %c0_i32 = arith.constant 0 : i32
    %c0_i32_0 = arith.constant 0 : i32
    return %c0_i32, %arg1 : i32, i32
  }
  func.func @transform_3(%arg0: i32, %arg1: i32) -> (i32, i32) {
    %c0_i32 = arith.constant 0 : i32
    return %arg0, %arg1 : i32, i32
  }
}

</mosaic_0001>

<llo_original>
// kernel: tpu_custom_call.1
$region0: #{tpu_custom_call.1}
  #allocation0 [shape = 'u32[]', space=smem, size = 0x4, offset = 0x4, fixed_abs, tag = 'smem constant byte address 0x4 - core index']
  #allocation1 [shape = 'u32[144,128]{1,0:T(1,128)}', space=vmem, size = 0x12000, scoped, tag = 'internal scratch']
  %s0 = inlined_call_operand.hbm [shape: f32[24,21], index: 0, kind: input, shape index: {}]
  %s1 = inlined_call_operand.hbm [shape: f32[21,128], index: 1, kind: input, shape index: {}]
  %s2 = inlined_call_operand.vmem [shape: f32[1,128], index: 2, kind: input, shape index: {}]
  %s3 = inlined_call_operand.hbm [shape: f32[24,128], index: 3, kind: output, shape index: {}]
  %s4 = sld [smem:[#allocation0]]
  $region30: #{tpu_custom_call.1} parent=0
    _
  %s6 = ssub.s32 1, %s4
  %s7 = scalar_select 0, %s6, %s4
  $region1: #{tpu_custom_call.1} parent=0
    #allocation2 [shape = 'u8[12288]{0}', space=vmem, size = 0x3000, scoped, tag = 'input window, operand 0, single buffered']
    #allocation3 [shape = 's32[1]{0}', space=sflag, size = 0x4, scoped, tag = 'scoped memory for tpu_custom_call.1']
    #allocation4 [shape = 's32[1]{0}', space=sflag, size = 0x4, scoped, tag = 'scoped memory for tpu_custom_call.1']
    #allocation5 [shape = 'u8[12288]{0}', space=vmem, size = 0x3000, scoped, tag = 'input window, operand 1, single buffered']
    #allocation6 [shape = 's32[1]{0}', space=sflag, size = 0x4, scoped, tag = 'scoped memory for tpu_custom_call.1']
    #allocation7 [shape = 'u8[12288]{0}', space=vmem, size = 0x3000, scoped, tag = 'output window, operand 0, single buffered']
    %8 = vsyncpa [#allocation3], 0
    %9 = vsyncpa [#allocation6], 0
    %10 = vsyncpa [#allocation4], 0
    // Predicated region
    $region2: #{tpu_custom_call.1} parent=1 // pred_check
      _
    $region3: #{tpu_custom_call.1} parent=1 // pred_check_branch
      %12 = sbr.rel (0) target = $region5
    $region4: #{tpu_custom_call.1} parent=1 // pred_region
      %s14 = ssub.s32 384, 384
      %15 = vsyncadd [#allocation3], %s14
      %s16 = sshll.u32 [#allocation2], 4
      %s17 = int_to_ptr.vmem [resolvable:$true] %s16
      %22 = dma.hbm_to_vmem [thread:$0]  %s0, 384, %s17, [#allocation3], 128, 128, 8
    $region5: #{tpu_custom_call.1} parent=1 // pred_fallthru
      _
    // Predicated region
    $region6: #{tpu_custom_call.1} parent=1 // pred_check
      _
    $region7: #{tpu_custom_call.1} parent=1 // pred_check_branch
      %24 = sbr.rel (0) target = $region9
    $region8: #{tpu_custom_call.1} parent=1 // pred_region
      %s26 = ssub.s32 384, 384
      %27 = vsyncadd [#allocation6], %s26
      %s28 = sshll.u32 [#allocation5], 4
      %s29 = int_to_ptr.vmem [resolvable:$true] %s28
      %34 = dma.hbm_to_vmem [thread:$0]  %s1, 384, %s29, [#allocation6], 128, 128, 8
    $region9: #{tpu_custom_call.1} parent=1 // pred_fallthru
      _
    // Predicated region
    $region10: #{tpu_custom_call.1} parent=1 // pred_check
      _
    $region11: #{tpu_custom_call.1} parent=1 // pred_check_branch
      %36 = sbr.rel (0) target = $region13
    $region12: #{tpu_custom_call.1} parent=1 // pred_region
      _
    $region13: #{tpu_custom_call.1} parent=1 // pred_fallthru
      _
    // Predicated region
    $region14: #{tpu_custom_call.1} parent=1 // pred_check
      _
    $region15: #{tpu_custom_call.1} parent=1 // pred_check_branch
      %38 = sbr.rel (0) target = $region17
    $region16: #{tpu_custom_call.1} parent=1 // pred_region
      %39 = dma.done [#allocation3], 384
    $region17: #{tpu_custom_call.1} parent=1 // pred_fallthru
      _
    // Predicated region
    $region18: #{tpu_custom_call.1} parent=1 // pred_check
      _
    $region19: #{tpu_custom_call.1} parent=1 // pred_check_branch
      %41 = sbr.rel (0) target = $region21
    $region20: #{tpu_custom_call.1} parent=1 // pred_region
      %42 = dma.done [#allocation6], 384
    $region21: #{tpu_custom_call.1} parent=1 // pred_fallthru
      _
    %v43 = vld [vmem:[#allocation2] sm:$0xff]
    %v44 = vld [vmem:[#allocation2 + $0x8] sm:$0xff]
    %v45 = vld [vmem:[#allocation2 + $0x10] sm:$0xff]
    %v46 = vld [vmem:[#allocation5] sm:$0xff]
    %v47 = vld [vmem:[#allocation5 + $0x8] sm:$0xff]
    %v48 = vld [vmem:[#allocation5 + $0x10] sm:$0x1f]
    %v49 = vld [vmem:[%s2] sm:$0x1]
    %v51 = vlaneseq
    %v52 = vshrl.u32 %v51, 7
    %v53 = vsub.s32 0, %v52
    %v54 = vrot.slane %v49, %v53
    %vm56 = vcmask 171008
    %v58 = vsel %vm56, %v43, 0
    %v61 = vsel %vm56, %v44, 0
    %v64 = vsel %vm56, %v45, 0
    %vm66 = vcmask 1044480
    %v68 = vsel %vm66, %v48, 0
    %70 = vmatprep.subr.mxu0 0.0
    %71 = vmatpush1.msra.mxu0 %v46
    %72 = vmatprep.subr.mxu0 0.0
    %73 = vmatpush1.msra.mxu0 %v47
    %74 = vmatprep.subr.mxu0 0.0
    %75 = vmatpush1.msra.mxu0 %v68
    %76 = vmatprep.subr.mxu0 0.0
    %77 = vmatpush1.msra.mxu0 0.0
    %78 = vmatprep.subr.mxu0 0.0
    %79 = vmatpush1.msra.mxu0 0.0
    %80 = vmatprep.subr.mxu0 0.0
    %81 = vmatpush1.msra.mxu0 0.0
    %82 = vmatprep.subr.mxu0 0.0
    %83 = vmatpush1.msra.mxu0 0.0
    %84 = vmatprep.subr.mxu0 0.0
    %85 = vmatpush1.msra.mxu0 0.0
    %86 = vmatprep.subr.mxu0 0.0
    %87 = vmatpush1.msra.mxu0 0.0
    %88 = vmatprep.subr.mxu0 0.0
    %89 = vmatpush1.msra.mxu0 0.0
    %90 = vmatprep.subr.mxu0 0.0
    %91 = vmatpush1.msra.mxu0 0.0
    %92 = vmatprep.subr.mxu0 0.0
    %93 = vmatpush1.msra.mxu0 0.0
    %94 = vmatprep.subr.mxu0 0.0
    %95 = vmatpush1.msra.mxu0 0.0
    %96 = vmatprep.subr.mxu0 0.0
    %97 = vmatpush1.msra.mxu0 0.0
    %98 = vmatprep.subr.mxu0 0.0
    %99 = vmatpush1.msra.mxu0 0.0
    %100 = vmatprep.subr.mxu0 0.0
    %101 = vmatpush1.msra.mxu0 0.0
    %102 = vmatprep.subr.mxu0 0.0
    %103 = vmatpush1.msra.mxu0 0.0
    %104 = vmatprep.subr.mxu0 0.0
    %105 = vmatpush1.msra.mxu0 0.0
    %106 = vmatprep.subr.mxu0 0.0
    %107 = vmatpush1.msra.mxu0 0.0
    %108 = vmatprep.subr.mxu0 0.0
    %109 = vmatpush1.msra.mxu0 0.0
    %110 = vmatprep.subr.mxu0 0.0
    %111 = vmatpush1.msra.mxu0 0.0
    %112 = vmatprep.subr.mxu0 0.0
    %113 = vmatpush1.msra.mxu0 0.0
    %114 = vmatprep.subr.mxu0 0.0
    %115 = vmatpush1.msra.mxu0 0.0
    %116 = vmatprep.subr.mxu0 0.0
    %117 = vmatpush1.msra.mxu0 0.0
    %118 = vmatprep.subr.mxu0 0.0
    %119 = vmatpush1.msra.mxu0 0.0
    %120 = vmatprep.subr.mxu0 0.0
    %121 = vmatpush1.msra.mxu0 0.0
    %122 = vmatprep.subr.mxu0 0.0
    %123 = vmatpush1.msra.mxu0 0.0
    %124 = vmatprep.subr.mxu0 0.0
    %125 = vmatpush1.msra.mxu0 0.0
    %126 = vmatprep.subr.mxu0 0.0
    %127 = vmatpush1.msra.mxu0 0.0
    %128 = vmatprep.subr.mxu0 0.0
    %129 = vmatpush1.msra.mxu0 0.0
    %130 = vmatprep.subr.mxu0 0.0
    %131 = vmatpush1.msra.mxu0 0.0
    %132 = vmatprep.subr.mxu0 0.0
    %133 = vmatpush1.msra.mxu0 0.0
    %134 = vmatprep.mubr.f32.mxu0 0.0
    %135 = vmatmul.mubr.f32.gmra.mrb[0].mxu0 %v58
    %v136 = vpop.f32.mrb[0].mxu0
    %v137 = vadd.f32 %v54, %v136
    %v138 = vpop.f32.mrb[0].mxu0
    %139 = vmatprep.mubr.f32.mxu0 0.0
    %140 = vmatmul.mubr.f32.gmra.mrb[0].mxu0 %v61
    %v141 = vpop.f32.mrb[0].mxu0
    %v142 = vadd.f32 %v54, %v141
    %v143 = vpop.f32.mrb[0].mxu0
    %144 = vmatprep.mubr.f32.mxu0 0.0
    %145 = vmatmul.mubr.f32.gmra.mrb[0].mxu0 %v64
    %v146 = vpop.f32.mrb[0].mxu0
    %v147 = vadd.f32 %v54, %v146
    %v148 = vpop.f32.mrb[0].mxu0
    %149 = vdwg.mxu0
    %150 = vst [vmem:[#allocation7] sm:$0xff] %v137
    %151 = vst [vmem:[#allocation7 + $0x8] sm:$0xff] %v142
    %152 = vst [vmem:[#allocation7 + $0x10] sm:$0xff] %v147
    // Predicated region
    $region22: #{tpu_custom_call.1} parent=1 // pred_check
      _
    $region23: #{tpu_custom_call.1} parent=1 // pred_check_branch
      %154 = sbr.rel (0) target = $region25
    $region24: #{tpu_custom_call.1} parent=1 // pred_region
      %s156 = ssub.s32 384, 384
      %157 = vsyncadd [#allocation4], %s156
      %s158 = sshll.u32 [#allocation7], 4
      %s159 = int_to_ptr.vmem [resolvable:$true] %s158
      %164 = dma.vmem_to_hbm [thread:$0]  %s159, 384, %s3, [#allocation4], 128, 128, 8
    $region25: #{tpu_custom_call.1} parent=1 // pred_fallthru
      _
    // Predicated region
    $region26: #{tpu_custom_call.1} parent=1 // pred_check
      _
    $region27: #{tpu_custom_call.1} parent=1 // pred_check_branch
      %166 = sbr.rel (0) target = $region29
    $region28: #{tpu_custom_call.1} parent=1 // pred_region
      %167 = dma.done [#allocation4], 384
    $region29: #{tpu_custom_call.1} parent=1 // pred_fallthru
      _
    %168 = vsyncpa [#allocation3], 1
    %169 = vsyncpa [#allocation6], 1
    %170 = vsyncpa [#allocation4], 1

</llo_original>
